<compile_context>
chip_gen: v5e
topology: v5e:2x2
jax: 0.10.0
libtpu: 0.0.40
codegen_flags: <defaults>
</compile_context>

<pallas_src>
import functools

import jax
import jax.numpy as jnp
from jax import lax
from jax.experimental import pallas as pl
from jax.experimental.pallas import tpu as pltpu


def _tiling_config():
    """Per-generation tile caps and scoped-VMEM budget.

    v5e / v6e have 128 MiB physical VMEM -> bigger output tiles cut the HBM
    re-fetch factor further.  v7x has only 64 MiB per TensorCore (and unknown
    chips get the same conservative config), so cap at 512-wide tiles and a
    <=48 MiB scoped limit to preserve double buffering.
    """
    try:
        kind = jax.devices()[0].device_kind.lower()
    except Exception:  # pragma: no cover - defensive
        kind = ""
    if "v5" in kind or "v6" in kind:
        return 1024, 512, 512, 96 * 1024 * 1024
    return 512, 512, 512, 48 * 1024 * 1024


def _wslinear_kernel(x_ref, w_ref, b_ref, o_ref, *, scale, k_total, block_k,
                     mask_k):
    # x_ref: (TM, TK)  activation tile (bf16 or f32)
    # w_ref: (TK, TN)  weight tile, already (K, N) layout
    # b_ref: (1,  TN)  f32 bias tile
    # o_ref: (TM, TN)  f32 output tile; resident across the K axis -> used
    #                  directly as the accumulator (no scratch needed).
    k = pl.program_id(2)

    @pl.when(k == 0)
    def _init():
        o_ref[...] = jnp.zeros_like(o_ref)

    x = x_ref[...]
    w = w_ref[...]
    if mask_k:
        # Ragged K tail (K % TK != 0): zero the out-of-range K slots of BOTH
        # operands so stale VMEM contents (possibly NaN) cannot leak into the
        # accumulation.  `mask_k` is a static Python bool, so aligned-K shapes
        # pay nothing for this.
        k_start = k * block_k
        col = k_start + lax.broadcasted_iota(jnp.int32, x.shape, 1)
        x = jnp.where(col < k_total, x, jnp.zeros_like(x))
        row = k_start + lax.broadcasted_iota(jnp.int32, w.shape, 0)
        w = jnp.where(row < k_total, w, jnp.zeros_like(w))

    o_ref[...] += jnp.dot(x, w, preferred_element_type=jnp.float32)

    @pl.when(k == pl.num_programs(2) - 1)
    def _finalize():
        # Fold the weight-standardization scale and the bias into one FMA:
        #   (x*scale) @ W^T + b == scale * (x @ W^T) + b
        o_ref[...] = o_ref[...] * scale + b_ref[...]


@functools.partial(jax.jit, static_argnames=("scale",))
def _wslinear_matmul(x2, w_t, bias2, *, scale):
    """scale * (x2 @ w_t) + bias2, f32 output.  x2: (M,K), w_t: (K,N)."""
    M, K = x2.shape
    _, N = w_t.shape

    tm_cap, tn_cap, tk_cap, vmem_bytes = _tiling_config()
    # Full-extent blocks are always legal (even if not 8/128 multiples), so a
    # dim smaller than its cap gets a single exact-size block -> zero padding
    # waste.  Larger dims use capped tiles with pl.cdiv boundary blocks.
    TM = M if M <= tm_cap else tm_cap
    TN = N if N <= tn_cap else tn_cap
    TK = K if K <= tk_cap else tk_cap
    mask_k = (K % TK) != 0

    grid = (pl.cdiv(M, TM), pl.cdiv(N, TN), pl.cdiv(K, TK))

    kernel = functools.partial(_wslinear_kernel, scale=scale, k_total=K,
                               block_k=TK, mask_k=mask_k)

    return pl.pallas_call(
        kernel,
        out_shape=jax.ShapeDtypeStruct((M, N), jnp.float32),
        grid_spec=pltpu.PrefetchScalarGridSpec(
            num_scalar_prefetch=0,
            grid=grid,
            in_specs=[
                pl.BlockSpec((TM, TK), lambda i, j, k: (i, k)),
                pl.BlockSpec((TK, TN), lambda i, j, k: (k, j)),
                pl.BlockSpec((1, TN), lambda i, j, k: (0, j)),
            ],
            out_specs=pl.BlockSpec((TM, TN), lambda i, j, k: (i, j)),
        ),
        compiler_params=pltpu.CompilerParams(
            dimension_semantics=("parallel", "parallel", "arbitrary"),
            vmem_limit_bytes=vmem_bytes,
        ),
        cost_estimate=pl.CostEstimate(
            flops=2 * M * N * K,
            transcendentals=0,
            bytes_accessed=(x2.dtype.itemsize * M * K
                            + w_t.dtype.itemsize * K * N
                            + 4 * M * N),
        ),
    )(x2, w_t, bias2)


def prepare_wslinear_params(weight, bias, gain=2.0, compute_dtype=jnp.bfloat16):
    """One-time parameter prep (do this OUTSIDE the hot forward path).

    weight: (out_features, in_features) f32 (PyTorch nn.Linear layout)
    bias:   (out_features,)             f32
    Returns (w_t, bias2, scale) with w_t in (K, N) layout and compute dtype,
    avoiding a per-call whole-W transpose/cast HBM round trip.
    """
    out_features, in_features = weight.shape
    scale = float((gain / in_features) ** 0.5)
    w_t = jnp.asarray(weight.T, dtype=compute_dtype)            # (K, N)
    bias2 = jnp.asarray(bias, dtype=jnp.float32).reshape(1, out_features)
    return w_t, bias2, scale


def wslinear_apply(x, w_t, bias2, scale):
    """WSLinear forward given pre-prepared params.  x: (..., in_features)."""
    K, N = w_t.shape
    lead = x.shape[:-1]
    x2 = x.reshape(-1, K).astype(w_t.dtype)   # wrapper-side cast halves DMA
    out = _wslinear_matmul(x2, w_t, bias2, scale=scale)
    return out.reshape(lead + (N,))


def wslinear_forward(x, weight, bias, gain=2.0, compute_dtype=jnp.bfloat16):
    """Convenience wrapper matching the PyTorch module's forward."""
    w_t, bias2, scale = prepare_wslinear_params(weight, bias, gain,
                                                compute_dtype)
    return wslinear_apply(x, w_t, bias2, scale)


def _reference(x, weight, bias, gain=2.0):
    scale = (gain / weight.shape[1]) ** 0.5
    return (x * scale) @ weight.T + bias


if __name__ == "__main__":
    key = jax.random.PRNGKey(0)
    k_x, k_w, k_x2, k_w2, k_b2, k_x3, k_w3, k_b3 = jax.random.split(key, 8)

    # --- Test 1: small shapes matching the module's harness (zeros bias). ---
    BATCH, IN_F, OUT_F = 2, 32, 64
    x = jax.random.normal(k_x, (BATCH, IN_F), dtype=jnp.float32)
    weight = jax.random.normal(k_w, (OUT_F, IN_F), dtype=jnp.float32)
    bias = jnp.zeros((OUT_F,), dtype=jnp.float32)
    ref = jax.block_until_ready(_reference(x, weight, bias))

    # Exact-f32 path (semantics identical to the PyTorch module).
    out_f32 = jax.block_until_ready(
        wslinear_forward(x, weight, bias, compute_dtype=jnp.float32))
    assert out_f32.shape == (BATCH, OUT_F), out_f32.shape
    assert jnp.allclose(out_f32, ref, atol=1e-4, rtol=1e-4), float(
        jnp.max(jnp.abs(out_f32 - ref)))

    # Default bf16-compute / f32-accumulate path.
    out_bf = jax.block_until_ready(wslinear_forward(x, weight, bias))
    assert out_bf.shape == (BATCH, OUT_F), out_bf.shape
    assert jnp.allclose(out_bf, ref, atol=2e-2, rtol=2e-2), float(
        jnp.max(jnp.abs(out_bf - ref)))

    # --- Test 2: non-tile-aligned multi-feature shapes, nonzero bias. -------
    B2, IN2, OUT2 = 300, 384, 320
    x2 = jax.random.normal(k_x2, (B2, IN2), dtype=jnp.float32)
    w2 = jax.random.normal(k_w2, (OUT2, IN2), dtype=jnp.float32)
    b2 = jax.random.normal(k_b2, (OUT2,), dtype=jnp.float32)
    out2 = jax.block_until_ready(wslinear_forward(x2, w2, b2))
    ref2 = jax.block_until_ready(_reference(x2, w2, b2))
    assert out2.shape == (B2, OUT2), out2.shape
    assert jnp.allclose(out2, ref2, atol=2e-2, rtol=2e-2), float(
        jnp.max(jnp.abs(out2 - ref2)))

    # --- Test 3: ragged M / N / K blocks (exercises boundary handling and ---
    # --- the in-kernel K-tail masking; params prepared once, reused). -------
    B3, IN3, OUT3 = 1100, 700, 650
    x3 = jax.random.normal(k_x3, (B3, IN3), dtype=jnp.float32)
    w3 = jax.random.normal(k_w3, (OUT3, IN3), dtype=jnp.float32)
    b3 = jax.random.normal(k_b3, (OUT3,), dtype=jnp.float32)
    w3_t, b3_2, scale3 = prepare_wslinear_params(w3, b3)   # one-time prep
    out3 = jax.block_until_ready(wslinear_apply(x3, w3_t, b3_2, scale3))
    ref3 = jax.block_until_ready(_reference(x3, w3, b3))
    assert out3.shape == (B3, OUT3), out3.shape
    assert jnp.allclose(out3, ref3, atol=2e-2, rtol=2e-2), float(
        jnp.max(jnp.abs(out3 - ref3)))

    print("KERNEL_OK")
</pallas_src>

<mosaic_0001>
module attributes {stable_mosaic.version = 11 : i64} {
  func.func @_wslinear_kernel(%arg0: i32, %arg1: i32, %arg2: i32, %arg3: memref<2x32xf32, #tpu.memory_space<vmem>>, %arg4: memref<32x64xf32, #tpu.memory_space<vmem>>, %arg5: memref<1x64xf32, #tpu.memory_space<vmem>>, %arg6: memref<2x64xf32, #tpu.memory_space<vmem>>) attributes {dimension_semantics = [#tpu.dimension_semantics<parallel>, #tpu.dimension_semantics<parallel>, #tpu.dimension_semantics<arbitrary>], iteration_bounds = array<i64: 1, 1, 1>, scalar_prefetch = 0 : i64, scratch_operands = 0 : i64, tpu.core_type = #tpu.core_type<tc>, window_params = [{transform_indices = @transform_0, window_bounds = array<i64: 2, 32>}, {transform_indices = @transform_1, window_bounds = array<i64: 32, 64>}, {transform_indices = @transform_2, window_bounds = array<i64: 1, 64>}, {transform_indices = @transform_3, window_bounds = array<i64: 2, 64>}]} {
    %c0_i32 = arith.constant 0 : i32
    %0 = arith.cmpi eq, %arg2, %c0_i32 : i32
    %1 = arith.extui %0 : i1 to i32
    %c0_i32_0 = arith.constant 0 : i32
    %2 = arith.cmpi ne, %1, %c0_i32_0 : i32
    scf.if %2 {
      %cst_10 = arith.constant 0.000000e+00 : f32
      %12 = vector.broadcast %cst_10 : f32 to vector<2x64xf32>
      %c0_11 = arith.constant 0 : index
      %c0_12 = arith.constant 0 : index
      %13 = vector.load %arg6[%c0_11, %c0_12] : memref<2x64xf32, #tpu.memory_space<vmem>>, vector<2x64xf32>
      tpu.vector_store %arg6[%c0_11, %c0_12], %12 {strides = array<i32>} : memref<2x64xf32, #tpu.memory_space<vmem>>, vector<2x64xf32>,
    } else {
    }
    %c0 = arith.constant 0 : index
    %c0_1 = arith.constant 0 : index
    %3 = vector.load %arg3[%c0, %c0_1] : memref<2x32xf32, #tpu.memory_space<vmem>>, vector<2x32xf32>
    %c0_2 = arith.constant 0 : index
    %c0_3 = arith.constant 0 : index
    %4 = vector.load %arg4[%c0_2, %c0_3] : memref<32x64xf32, #tpu.memory_space<vmem>>, vector<32x64xf32>
    %c0_4 = arith.constant 0 : index
    %c0_5 = arith.constant 0 : index
    %5 = vector.load %arg6[%c0_4, %c0_5] : memref<2x64xf32, #tpu.memory_space<vmem>>, vector<2x64xf32>
    %cst = arith.constant dense<0.000000e+00> : vector<2x64xf32>
    %6 = tpu.matmul %3, %4, %cst {dimension_numbers = #tpu.dot_dimension_numbers<[1], [0], [0], [1], [0, 0, 1, 1], [], []>} : vector<2x32xf32>, vector<32x64xf32>, vector<2x64xf32> -> vector<2x64xf32>
    %7 = arith.addf %5, %6 : vector<2x64xf32>
    %c0_6 = arith.constant 0 : index
    %c0_7 = arith.constant 0 : index
    %8 = vector.load %arg6[%c0_6, %c0_7] : memref<2x64xf32, #tpu.memory_space<vmem>>, vector<2x64xf32>
    tpu.vector_store %arg6[%c0_6, %c0_7], %7 {strides = array<i32>} : memref<2x64xf32, #tpu.memory_space<vmem>>, vector<2x64xf32>,
    %c0_i32_8 = arith.constant 0 : i32
    %9 = arith.cmpi eq, %arg2, %c0_i32_8 : i32
    %10 = arith.extui %9 : i1 to i32
    %c0_i32_9 = arith.constant 0 : i32
    %11 = arith.cmpi ne, %10, %c0_i32_9 : i32
    scf.if %11 {
      %c0_10 = arith.constant 0 : index
      %c0_11 = arith.constant 0 : index
      %12 = vector.load %arg6[%c0_10, %c0_11] : memref<2x64xf32, #tpu.memory_space<vmem>>, vector<2x64xf32>
      %cst_12 = arith.constant 2.500000e-01 : f32
      %13 = vector.broadcast %cst_12 : f32 to vector<2x64xf32>
      %14 = arith.mulf %12, %13 : vector<2x64xf32>
      %c0_13 = arith.constant 0 : index
      %c0_14 = arith.constant 0 : index
      %15 = vector.load %arg5[%c0_13, %c0_14] : memref<1x64xf32, #tpu.memory_space<vmem>>, vector<1x64xf32>
      %16 = vector.broadcast %15 : vector<1x64xf32> to vector<2x64xf32>
      %17 = arith.addf %14, %16 : vector<2x64xf32>
      %c0_15 = arith.constant 0 : index
      %c0_16 = arith.constant 0 : index
      %18 = vector.load %arg6[%c0_15, %c0_16] : memref<2x64xf32, #tpu.memory_space<vmem>>, vector<2x64xf32>
      tpu.vector_store %arg6[%c0_15, %c0_16], %17 {strides = array<i32>} : memref<2x64xf32, #tpu.memory_space<vmem>>, vector<2x64xf32>,
    } else {
    }
    return
  }
  func.func @transform_0(%arg0: i32, %arg1: i32, %arg2: i32) -> (i32, i32) {
    %c0_i32 = arith.constant 0 : i32
    return %arg0, %arg2 : i32, i32
  }
  func.func @transform_1(%arg0: i32, %arg1: i32, %arg2: i32) -> (i32, i32) {
    %c0_i32 = arith.constant 0 : i32
    return %arg2, %arg1 : i32, i32
  }
  func.func @transform_2(%arg0: i32, %arg1: i32, %arg2: i32) -> (i32, i32) {
    %c0_i32 = arith.constant 0 : i32
    %c0_i32_0 = arith.constant 0 : i32
    return %c0_i32, %arg1 : i32, i32
  }
  func.func @transform_3(%arg0: i32, %arg1: i32, %arg2: i32) -> (i32, i32) {
    %c0_i32 = arith.constant 0 : i32
    return %arg0, %arg1 : i32, i32
  }
}

</mosaic_0001>

<llo_original>
// kernel: _wslinear_matmul.1
$region0: #{_wslinear_matmul.1}
  #allocation0 [shape = 'u32[]', space=smem, size = 0x4, offset = 0x4, fixed_abs, tag = 'smem constant byte address 0x4 - core index']
  #allocation1 [shape = 'u32[72,128]{1,0:T(1,128)}', space=vmem, size = 0x9000, scoped, tag = 'internal scratch']
  %s0 = inlined_call_operand.hbm [shape: f32[2,32], index: 0, kind: input, shape index: {}]
  %s1 = inlined_call_operand.hbm [shape: f32[32,64], index: 1, kind: input, shape index: {}]
  %s2 = inlined_call_operand.vmem [shape: f32[1,64], index: 2, kind: input, shape index: {}]
  %s3 = inlined_call_operand.hbm [shape: f32[2,64], index: 3, kind: output, shape index: {}]
  %s4 = sld [smem:[#allocation0]]
  $region38: #{_wslinear_matmul.1} parent=0
    _
  %s6 = ssub.s32 1, %s4
  %s7 = scalar_select 0, %s6, %s4
  $region1: #{_wslinear_matmul.1} parent=0
    #allocation2 [shape = 'u8[1024]{0}', space=vmem, size = 0x400, scoped, tag = 'input window, operand 0, single buffered']
    #allocation3 [shape = 's32[1]{0}', space=sflag, size = 0x4, scoped, tag = 'scoped memory for _wslinear_matmul.1']
    #allocation4 [shape = 's32[1]{0}', space=sflag, size = 0x4, scoped, tag = 'scoped memory for _wslinear_matmul.1']
    #allocation5 [shape = 'u8[16384]{0}', space=vmem, size = 0x4000, scoped, tag = 'input window, operand 1, single buffered']
    #allocation6 [shape = 's32[1]{0}', space=sflag, size = 0x4, scoped, tag = 'scoped memory for _wslinear_matmul.1']
    #allocation7 [shape = 'u8[1024]{0}', space=vmem, size = 0x400, scoped, tag = 'output window, operand 0, single buffered']
    %8 = vsyncpa [#allocation3], 0
    %9 = vsyncpa [#allocation6], 0
    %10 = vsyncpa [#allocation4], 0
    // Predicated region
    $region2: #{_wslinear_matmul.1} parent=1 // pred_check
      _
    $region3: #{_wslinear_matmul.1} parent=1 // pred_check_branch
      %12 = sbr.rel (0) target = $region5
    $region4: #{_wslinear_matmul.1} parent=1 // pred_region
      %14 = vsyncadd [#allocation3], 0
      %s16 = sshll.u32 %s0, 4
      %s17 = int_to_ptr.hbm [resolvable:$true] %s16
      %s18 = sshll.u32 [#allocation2], 4
      %s19 = int_to_ptr.vmem [resolvable:$true] %s18
      %21 = dma.hbm_to_vmem [thread:$0]  %s17, 32, %s19, [#allocation3]
    $region5: #{_wslinear_matmul.1} parent=1 // pred_fallthru
      _
    // Predicated region
    $region6: #{_wslinear_matmul.1} parent=1 // pred_check
      _
    $region7: #{_wslinear_matmul.1} parent=1 // pred_check_branch
      %23 = sbr.rel (0) target = $region9
    $region8: #{_wslinear_matmul.1} parent=1 // pred_region
      %25 = vsyncadd [#allocation6], 0
      %s26 = sshll.u32 %s1, 4
      %s27 = int_to_ptr.hbm [resolvable:$true] %s26
      %s28 = sshll.u32 [#allocation5], 4
      %s29 = int_to_ptr.vmem [resolvable:$true] %s28
      %34 = dma.hbm_to_vmem [thread:$0]  %s27, 512, %s29, [#allocation6], 128, 128, 8
    $region9: #{_wslinear_matmul.1} parent=1 // pred_fallthru
      _
    // Predicated region
    $region10: #{_wslinear_matmul.1} parent=1 // pred_check
      _
    $region11: #{_wslinear_matmul.1} parent=1 // pred_check_branch
      %36 = sbr.rel (0) target = $region13
    $region12: #{_wslinear_matmul.1} parent=1 // pred_region
      _
    $region13: #{_wslinear_matmul.1} parent=1 // pred_fallthru
      _
    // Predicated region
    $region14: #{_wslinear_matmul.1} parent=1 // pred_check
      _
    $region15: #{_wslinear_matmul.1} parent=1 // pred_check_branch
      %38 = sbr.rel (0) target = $region17
    $region16: #{_wslinear_matmul.1} parent=1 // pred_region
      %40 = dma.done [#allocation3], 32
    $region17: #{_wslinear_matmul.1} parent=1 // pred_fallthru
      _
    // Predicated region
    $region18: #{_wslinear_matmul.1} parent=1 // pred_check
      _
    $region19: #{_wslinear_matmul.1} parent=1 // pred_check_branch
      %42 = sbr.rel (0) target = $region21
    $region20: #{_wslinear_matmul.1} parent=1 // pred_region
      %44 = dma.done [#allocation6], 512
    $region21: #{_wslinear_matmul.1} parent=1 // pred_fallthru
      _
    %p45 = scmp.eq.s32.totalorder 0, 0
    // Predicated region
    $region22: #{_wslinear_matmul.1} parent=1 // pred_check
      %p46 = pneg %p45
    $region23: #{_wslinear_matmul.1} parent=1 // pred_check_branch
      %48 = sbr.rel (%p46) target = $region25
    $region24: #{_wslinear_matmul.1} parent=1 // pred_region
      %vm49 = vcmask 517120
      %50 = vst.msk [vmem:[#allocation7] sm:$0x3] %vm49, 0.0
    $region25: #{_wslinear_matmul.1} parent=1 // pred_fallthru
      _
    %v51 = vld [vmem:[#allocation2] sm:$0x3]
    %v52 = vld [vmem:[#allocation5] sm:$0xff]
    %v53 = vld [vmem:[#allocation5 + $0x8] sm:$0xff]
    %v54 = vld [vmem:[#allocation5 + $0x10] sm:$0xff]
    %v55 = vld [vmem:[#allocation5 + $0x18] sm:$0xff]
    %v56 = vld [vmem:[#allocation7] sm:$0x3]
    %vm57 = vcmask 261120
    %v59 = vsel %vm57, %v51, 0
    %61 = vmatpush.msra.mxu0 0.0
    %62 = vmatpush.msra.mxu0 0.0
    %63 = vmatpush.msra.mxu0 0.0
    %64 = vmatpush.msra.mxu0 0.0
    %65 = vmatpush.msra.mxu0 0.0
    %66 = vmatpush.msra.mxu0 0.0
    %67 = vmatpush.msra.mxu0 0.0
    %68 = vmatpush.msra.mxu0 0.0
    %69 = vmatpush.msra.mxu0 0.0
    %70 = vmatpush.msra.mxu0 0.0
    %71 = vmatpush.msra.mxu0 0.0
    %72 = vmatpush.msra.mxu0 0.0
    %73 = vmatpush.msra.mxu0 %v55
    %74 = vmatpush.msra.mxu0 %v54
    %75 = vmatpush.msra.mxu0 %v53
    %76 = vmatpush.msra.mxu0 %v52
    %77 = vmatmul.f32.gmra.mxu0 %v59
    %v78 = vpop.f32.mrf.mxu0
    %v79 = vadd.f32 0.0, %v78
    %80 = vdwg.mxu0
    %v81 = vadd.f32 %v56, %v79
    %vm82 = vcmask 517120
    %83 = vst.msk [vmem:[#allocation7] sm:$0x3] %vm82, %v81
    // Predicated region
    $region26: #{_wslinear_matmul.1} parent=1 // pred_check
      %p84 = pneg %p45
    $region27: #{_wslinear_matmul.1} parent=1 // pred_check_branch
      %86 = sbr.rel (%p84) target = $region29
    $region28: #{_wslinear_matmul.1} parent=1 // pred_region
      %v87 = vld [vmem:[#allocation7] sm:$0x3]
      %v88 = vmul.f32 %v87, 0.25
      %v89 = vld [vmem:[%s2] sm:$0x1]
      %v91 = vperm.slane %v89, 0
      %v93 = vadd.f32 %v88, %v91
      %94 = vst.msk [vmem:[#allocation7] sm:$0x3] %vm82, %v93
    $region29: #{_wslinear_matmul.1} parent=1 // pred_fallthru
      _
    // Predicated region
    $region30: #{_wslinear_matmul.1} parent=1 // pred_check
      _
    $region31: #{_wslinear_matmul.1} parent=1 // pred_check_branch
      %96 = sbr.rel (0) target = $region33
    $region32: #{_wslinear_matmul.1} parent=1 // pred_region
      %98 = vsyncadd [#allocation4], 0
      %s100 = sshll.u32 [#allocation7], 4
      %s101 = int_to_ptr.vmem [resolvable:$true] %s100
      %s102 = sshll.u32 %s3, 4
      %s103 = int_to_ptr.hbm [resolvable:$true] %s102
      %105 = dma.vmem_to_hbm [thread:$0]  %s101, 32, %s103, [#allocation4]
    $region33: #{_wslinear_matmul.1} parent=1 // pred_fallthru
      _
    // Predicated region
    $region34: #{_wslinear_matmul.1} parent=1 // pred_check
      _
    $region35: #{_wslinear_matmul.1} parent=1 // pred_check_branch
      %107 = sbr.rel (0) target = $region37
    $region36: #{_wslinear_matmul.1} parent=1 // pred_region
      %109 = dma.done [#allocation4], 32
    $region37: #{_wslinear_matmul.1} parent=1 // pred_fallthru
      _
    %110 = vsyncpa [#allocation3], 1
    %111 = vsyncpa [#allocation6], 1
    %112 = vsyncpa [#allocation4], 1

</llo_original>
